<compile_context>
chip_gen: v6e
topology: v6e:2x2x1
jax: 0.10.0
libtpu: 0.0.40
codegen_flags: <defaults>
</compile_context>

<pallas_src>
import functools

import jax
import jax.numpy as jnp
from jax import lax
from jax.experimental import pallas as pl
from jax.experimental.pallas import tpu as pltpu

LANES = 128
MAX_TILE_ROWS = 1024  # (1024, 128) f32 block = 512 KiB per stream per buffer


def _round_up(a, b):
    return ((a + b - 1) // b) * b


def _bce_dice_kernel(x_ref, t_ref, acc_ref, *, n_valid, tile_rows,
                     tiles_per_core, has_pad):
    """Accumulate per-core (4, 8, 128) partial sums of [p*t, p, t, bce],
    where p = sigmoid(x) and bce = softplus(x) - t*x (stable logits form)."""
    c = pl.program_id(0)   # TensorCore split ("parallel")
    i = pl.program_id(1)   # tile index within this core ("arbitrary")

    @pl.when(i == 0)
    def _():
        acc_ref[...] = jnp.zeros_like(acc_ref)

    x = x_ref[...].astype(jnp.float32)
    t = t_ref[...].astype(jnp.float32)

    # One exp serves both sigmoid and softplus.
    e = jnp.exp(-jnp.abs(x))
    p = jnp.where(x >= 0.0, 1.0, e) / (1.0 + e)            # sigmoid(x), stable
    bce = jnp.maximum(x, 0.0) + jnp.log1p(e) - t * x       # softplus(x) - t*x

    sub_groups = tile_rows // 8

    def _accumulate(p_, bce_):
        # Reduce the (tile_rows, 128) tile to an (8, 128) vreg partial with
        # pure VPU adds (no per-step cross-lane XLU reduction).
        def part(v):
            return jnp.sum(v.reshape(sub_groups, 8, LANES), axis=0)

        acc_ref[0, 0] += part(p_ * t)   # intersection
        acc_ref[0, 1] += part(p_)       # sum(sigmoid)
        acc_ref[0, 2] += part(t)        # sum(targets) (zero-padded, no mask needed)
        acc_ref[0, 3] += part(bce_)     # sum(BCE)

    if not has_pad:
        _accumulate(p, bce)
    else:
        tile_elems = tile_rows * LANES
        start = (c * tiles_per_core + i) * tile_elems
        needs_mask = (start + tile_elems) > n_valid

        @pl.when(jnp.logical_not(needs_mask))
        def _():
            _accumulate(p, bce)

        @pl.when(needs_mask)
        def _():
            row = lax.broadcasted_iota(jnp.int32, (tile_rows, LANES), 0)
            lane = lax.broadcasted_iota(jnp.int32, (tile_rows, LANES), 1)
            idx = start + row * LANES + lane
            m = (idx < n_valid).astype(jnp.float32)
            _accumulate(p * m, bce * m)


@functools.partial(jax.jit, static_argnames=("smooth",))
def bce_dice_loss(inputs, targets, smooth=1.0):
    """JAX/Pallas equivalent of BCEDiceLoss.forward(inputs, targets, smooth)."""
    x = inputs.reshape(-1)
    t = targets.reshape(-1)
    n = x.shape[0]

    rows = _round_up(-(-n // LANES), 8)
    tile_rows = min(MAX_TILE_ROWS, rows)
    num_cores = 2 if rows > tile_rows else 1       # v7x megacore split when useful
    rows_padded = _round_up(rows, tile_rows * num_cores)
    n_padded = rows_padded * LANES
    tiles_per_core = rows_padded // (tile_rows * num_cores)
    has_pad = n_padded != n

    if has_pad:  # static branch: skip the extra pad pass when already aligned
        x = jnp.pad(x, (0, n_padded - n))
        t = jnp.pad(t, (0, n_padded - n))
    x2 = x.reshape(rows_padded, LANES)
    t2 = t.reshape(rows_padded, LANES)

    in_spec = pl.BlockSpec((tile_rows, LANES),
                           lambda c, i: (c * tiles_per_core + i, 0))
    out_spec = pl.BlockSpec((1, 4, 8, LANES), lambda c, i: (c, 0, 0, 0))

    kernel = functools.partial(
        _bce_dice_kernel, n_valid=n, tile_rows=tile_rows,
        tiles_per_core=tiles_per_core, has_pad=has_pad)

    partials = pl.pallas_call(
        kernel,
        out_shape=jax.ShapeDtypeStruct((num_cores, 4, 8, LANES), jnp.float32),
        grid_spec=pltpu.PrefetchScalarGridSpec(
            num_scalar_prefetch=0,
            grid=(num_cores, tiles_per_core),
            in_specs=[in_spec, in_spec],
            out_specs=out_spec),
        compiler_params=pltpu.CompilerParams(
            dimension_semantics=("parallel", "arbitrary")),
    )(x2, t2)

    # Tiny final reduction in JAX glue (done once, not per grid step).
    sums = jnp.sum(partials, axis=(0, 2, 3))       # (4,)
    intersection, sum_p, sum_t, sum_bce = sums[0], sums[1], sums[2], sums[3]

    dice_loss = 1.0 - (2.0 * intersection + smooth) / (sum_p + sum_t + smooth)
    bce = sum_bce / n
    return bce + dice_loss


def _reference(inputs, targets, smooth=1.0):
    p = jax.nn.sigmoid(inputs.reshape(-1).astype(jnp.float32))
    t = targets.reshape(-1).astype(jnp.float32)
    intersection = jnp.sum(p * t)
    dice = 1.0 - (2.0 * intersection + smooth) / (jnp.sum(p) + jnp.sum(t) + smooth)
    eps = 1e-12
    bce = -jnp.mean(t * jnp.log(p + eps) + (1.0 - t) * jnp.log(1.0 - p + eps))
    return bce + dice


if __name__ == "__main__":
    key = jax.random.PRNGKey(0)

    # Main case: NCHW logits + binary targets (the module flattens them anyway).
    k1, k2 = jax.random.split(key)
    inputs = jax.random.normal(k1, (2, 4, 16, 16), dtype=jnp.float32)
    targets = (jax.random.uniform(k2, (2, 4, 16, 16)) > 0.5).astype(jnp.float32)

    out = jax.block_until_ready(bce_dice_loss(inputs, targets, smooth=1.0))
    ref = _reference(inputs, targets, smooth=1.0)
    assert jnp.allclose(out, ref, atol=1e-4, rtol=1e-4), (out, ref)

    # Extra case: size not a multiple of the tile -> exercises the in-kernel tail mask.
    k3, k4 = jax.random.split(k2)
    inputs2 = jax.random.normal(k3, (1, 3, 7, 11), dtype=jnp.float32)
    targets2 = (jax.random.uniform(k4, (1, 3, 7, 11)) > 0.5).astype(jnp.float32)
    out2 = jax.block_until_ready(bce_dice_loss(inputs2, targets2, smooth=1.0))
    ref2 = _reference(inputs2, targets2, smooth=1.0)
    assert jnp.allclose(out2, ref2, atol=1e-4, rtol=1e-4), (out2, ref2)

    # Extra case: large enough to span multiple tiles -> exercises the
    # two-TensorCore "parallel" split (no padding, full tiles).
    k5, k6 = jax.random.split(k4)
    inputs3 = jax.random.normal(k5, (2, 8, 128, 128), dtype=jnp.float32)
    targets3 = (jax.random.uniform(k6, (2, 8, 128, 128)) > 0.5).astype(jnp.float32)
    out3 = jax.block_until_ready(bce_dice_loss(inputs3, targets3, smooth=1.0))
    ref3 = _reference(inputs3, targets3, smooth=1.0)
    assert jnp.allclose(out3, ref3, atol=1e-4, rtol=1e-4), (out3, ref3)

    print("KERNEL_OK")
</pallas_src>

<mosaic_0001>
module attributes {stable_mosaic.version = 11 : i64} {
  func.func @_bce_dice_kernel(%arg0: i32, %arg1: i32, %arg2: memref<16x128xf32, #tpu.memory_space<vmem>>, %arg3: memref<16x128xf32, #tpu.memory_space<vmem>>, %arg4: memref<1x4x8x128xf32, #tpu.memory_space<vmem>>) attributes {dimension_semantics = [#tpu.dimension_semantics<parallel>, #tpu.dimension_semantics<arbitrary>], iteration_bounds = array<i64: 1, 1>, scalar_prefetch = 0 : i64, scratch_operands = 0 : i64, tpu.core_type = #tpu.core_type<tc>, window_params = [{transform_indices = @transform_0, window_bounds = array<i64: 16, 128>}, {transform_indices = @transform_1, window_bounds = array<i64: 16, 128>}, {transform_indices = @transform_2, window_bounds = array<i64: 1, 4, 8, 128>}]} {
    %c0_i32 = arith.constant 0 : i32
    %0 = arith.cmpi eq, %arg1, %c0_i32 : i32
    %1 = arith.extui %0 : i1 to i32
    %c0_i32_0 = arith.constant 0 : i32
    %2 = arith.cmpi ne, %1, %c0_i32_0 : i32
    scf.if %2 {
      %cst_41 = arith.constant 0.000000e+00 : f32
      %55 = vector.broadcast %cst_41 : f32 to vector<1x4x8x128xf32>
      %c0_42 = arith.constant 0 : index
      %c0_43 = arith.constant 0 : index
      %c0_44 = arith.constant 0 : index
      %c0_45 = arith.constant 0 : index
      %56 = vector.load %arg4[%c0_42, %c0_43, %c0_44, %c0_45] : memref<1x4x8x128xf32, #tpu.memory_space<vmem>>, vector<1x4x8x128xf32>
      tpu.vector_store %arg4[%c0_42, %c0_43, %c0_44, %c0_45], %55 {strides = array<i32>} : memref<1x4x8x128xf32, #tpu.memory_space<vmem>>, vector<1x4x8x128xf32>,
    } else {
    }
    %c0 = arith.constant 0 : index
    %c0_1 = arith.constant 0 : index
    %3 = vector.load %arg2[%c0, %c0_1] : memref<16x128xf32, #tpu.memory_space<vmem>>, vector<16x128xf32>
    %c0_2 = arith.constant 0 : index
    %c0_3 = arith.constant 0 : index
    %4 = vector.load %arg3[%c0_2, %c0_3] : memref<16x128xf32, #tpu.memory_space<vmem>>, vector<16x128xf32>
    %5 = math.absf %3 : vector<16x128xf32>
    %cst = arith.constant 0.000000e+00 : f32
    %6 = vector.broadcast %cst : f32 to vector<16x128xf32>
    %7 = arith.subf %6, %5 : vector<16x128xf32>
    %8 = math.exp %7 : vector<16x128xf32>
    %cst_4 = arith.constant 0.000000e+00 : f32
    %9 = vector.broadcast %cst_4 : f32 to vector<16x128xf32>
    %10 = arith.cmpf oge, %3, %9 : vector<16x128xf32>
    %cst_5 = arith.constant 1.000000e+00 : f32
    %11 = vector.broadcast %cst_5 : f32 to vector<16x128xf32>
    %12 = arith.select %10, %11, %8 : vector<16x128xi1>, vector<16x128xf32>
    %cst_6 = arith.constant 1.000000e+00 : f32
    %13 = vector.broadcast %cst_6 : f32 to vector<16x128xf32>
    %14 = arith.addf %13, %8 : vector<16x128xf32>
    %15 = arith.divf %12, %14 : vector<16x128xf32>
    %cst_7 = arith.constant 0.000000e+00 : f32
    %16 = vector.broadcast %cst_7 : f32 to vector<16x128xf32>
    %17 = arith.maximumf %3, %16 : vector<16x128xf32>
    %18 = math.log1p %8 : vector<16x128xf32>
    %19 = arith.addf %17, %18 : vector<16x128xf32>
    %20 = arith.mulf %4, %3 : vector<16x128xf32>
    %21 = arith.subf %19, %20 : vector<16x128xf32>
    %c0_8 = arith.constant 0 : index
    %c0_9 = arith.constant 0 : index
    %c0_10 = arith.constant 0 : index
    %c0_11 = arith.constant 0 : index
    %22 = vector.load %arg4[%c0_8, %c0_9, %c0_10, %c0_11] : memref<1x4x8x128xf32, #tpu.memory_space<vmem>>, vector<1x1x8x128xf32>
    %23 = vector.shape_cast %22 : vector<1x1x8x128xf32> to vector<8x128xf32>
    %24 = arith.mulf %15, %4 : vector<16x128xf32>
    %25 = vector.shape_cast %24 : vector<16x128xf32> to vector<2x8x128xf32>
    %cst_12 = arith.constant dense<0.000000e+00> : vector<8x128xf32>
    %26 = vector.multi_reduction <add>, %25, %cst_12 [0] : vector<2x8x128xf32> to vector<8x128xf32>
    %27 = arith.addf %23, %26 : vector<8x128xf32>
    %c0_13 = arith.constant 0 : index
    %c0_14 = arith.constant 0 : index
    %c0_15 = arith.constant 0 : index
    %c0_16 = arith.constant 0 : index
    %28 = vector.load %arg4[%c0_13, %c0_14, %c0_15, %c0_16] : memref<1x4x8x128xf32, #tpu.memory_space<vmem>>, vector<1x1x8x128xf32>
    %29 = vector.shape_cast %28 : vector<1x1x8x128xf32> to vector<8x128xf32>
    %30 = vector.shape_cast %27 : vector<8x128xf32> to vector<1x1x8x128xf32>
    tpu.vector_store %arg4[%c0_13, %c0_14, %c0_15, %c0_16], %30 {strides = array<i32>} : memref<1x4x8x128xf32, #tpu.memory_space<vmem>>, vector<1x1x8x128xf32>,
    %c0_17 = arith.constant 0 : index
    %c1 = arith.constant 1 : index
    %c0_18 = arith.constant 0 : index
    %c0_19 = arith.constant 0 : index
    %31 = vector.load %arg4[%c0_17, %c1, %c0_18, %c0_19] : memref<1x4x8x128xf32, #tpu.memory_space<vmem>>, vector<1x1x8x128xf32>
    %32 = vector.shape_cast %31 : vector<1x1x8x128xf32> to vector<8x128xf32>
    %33 = vector.shape_cast %15 : vector<16x128xf32> to vector<2x8x128xf32>
    %cst_20 = arith.constant dense<0.000000e+00> : vector<8x128xf32>
    %34 = vector.multi_reduction <add>, %33, %cst_20 [0] : vector<2x8x128xf32> to vector<8x128xf32>
    %35 = arith.addf %32, %34 : vector<8x128xf32>
    %c0_21 = arith.constant 0 : index
    %c1_22 = arith.constant 1 : index
    %c0_23 = arith.constant 0 : index
    %c0_24 = arith.constant 0 : index
    %36 = vector.load %arg4[%c0_21, %c1_22, %c0_23, %c0_24] : memref<1x4x8x128xf32, #tpu.memory_space<vmem>>, vector<1x1x8x128xf32>
    %37 = vector.shape_cast %36 : vector<1x1x8x128xf32> to vector<8x128xf32>
    %38 = vector.shape_cast %35 : vector<8x128xf32> to vector<1x1x8x128xf32>
    tpu.vector_store %arg4[%c0_21, %c1_22, %c0_23, %c0_24], %38 {strides = array<i32>} : memref<1x4x8x128xf32, #tpu.memory_space<vmem>>, vector<1x1x8x128xf32>,
    %c0_25 = arith.constant 0 : index
    %c2 = arith.constant 2 : index
    %c0_26 = arith.constant 0 : index
    %c0_27 = arith.constant 0 : index
    %39 = vector.load %arg4[%c0_25, %c2, %c0_26, %c0_27] : memref<1x4x8x128xf32, #tpu.memory_space<vmem>>, vector<1x1x8x128xf32>
    %40 = vector.shape_cast %39 : vector<1x1x8x128xf32> to vector<8x128xf32>
    %41 = vector.shape_cast %4 : vector<16x128xf32> to vector<2x8x128xf32>
    %cst_28 = arith.constant dense<0.000000e+00> : vector<8x128xf32>
    %42 = vector.multi_reduction <add>, %41, %cst_28 [0] : vector<2x8x128xf32> to vector<8x128xf32>
    %43 = arith.addf %40, %42 : vector<8x128xf32>
    %c0_29 = arith.constant 0 : index
    %c2_30 = arith.constant 2 : index
    %c0_31 = arith.constant 0 : index
    %c0_32 = arith.constant 0 : index
    %44 = vector.load %arg4[%c0_29, %c2_30, %c0_31, %c0_32] : memref<1x4x8x128xf32, #tpu.memory_space<vmem>>, vector<1x1x8x128xf32>
    %45 = vector.shape_cast %44 : vector<1x1x8x128xf32> to vector<8x128xf32>
    %46 = vector.shape_cast %43 : vector<8x128xf32> to vector<1x1x8x128xf32>
    tpu.vector_store %arg4[%c0_29, %c2_30, %c0_31, %c0_32], %46 {strides = array<i32>} : memref<1x4x8x128xf32, #tpu.memory_space<vmem>>, vector<1x1x8x128xf32>,
    %c0_33 = arith.constant 0 : index
    %c3 = arith.constant 3 : index
    %c0_34 = arith.constant 0 : index
    %c0_35 = arith.constant 0 : index
    %47 = vector.load %arg4[%c0_33, %c3, %c0_34, %c0_35] : memref<1x4x8x128xf32, #tpu.memory_space<vmem>>, vector<1x1x8x128xf32>
    %48 = vector.shape_cast %47 : vector<1x1x8x128xf32> to vector<8x128xf32>
    %49 = vector.shape_cast %21 : vector<16x128xf32> to vector<2x8x128xf32>
    %cst_36 = arith.constant dense<0.000000e+00> : vector<8x128xf32>
    %50 = vector.multi_reduction <add>, %49, %cst_36 [0] : vector<2x8x128xf32> to vector<8x128xf32>
    %51 = arith.addf %48, %50 : vector<8x128xf32>
    %c0_37 = arith.constant 0 : index
    %c3_38 = arith.constant 3 : index
    %c0_39 = arith.constant 0 : index
    %c0_40 = arith.constant 0 : index
    %52 = vector.load %arg4[%c0_37, %c3_38, %c0_39, %c0_40] : memref<1x4x8x128xf32, #tpu.memory_space<vmem>>, vector<1x1x8x128xf32>
    %53 = vector.shape_cast %52 : vector<1x1x8x128xf32> to vector<8x128xf32>
    %54 = vector.shape_cast %51 : vector<8x128xf32> to vector<1x1x8x128xf32>
    tpu.vector_store %arg4[%c0_37, %c3_38, %c0_39, %c0_40], %54 {strides = array<i32>} : memref<1x4x8x128xf32, #tpu.memory_space<vmem>>, vector<1x1x8x128xf32>,
    return
  }
  func.func @transform_0(%arg0: i32, %arg1: i32) -> (i32, i32) {
    %c1_i32 = arith.constant 1 : i32
    %0 = arith.muli %arg0, %c1_i32 : i32
    %1 = arith.addi %0, %arg1 : i32
    %c0_i32 = arith.constant 0 : i32
    %c0_i32_0 = arith.constant 0 : i32
    return %1, %c0_i32 : i32, i32
  }
  func.func @transform_1(%arg0: i32, %arg1: i32) -> (i32, i32) {
    %c1_i32 = arith.constant 1 : i32
    %0 = arith.muli %arg0, %c1_i32 : i32
    %1 = arith.addi %0, %arg1 : i32
    %c0_i32 = arith.constant 0 : i32
    %c0_i32_0 = arith.constant 0 : i32
    return %1, %c0_i32 : i32, i32
  }
  func.func @transform_2(%arg0: i32, %arg1: i32) -> (i32, i32, i32, i32) {
    %c0_i32 = arith.constant 0 : i32
    %c0_i32_0 = arith.constant 0 : i32
    %c0_i32_1 = arith.constant 0 : i32
    %c0_i32_2 = arith.constant 0 : i32
    return %arg0, %c0_i32, %c0_i32_0, %c0_i32_1 : i32, i32, i32, i32
  }
}

</mosaic_0001>

<llo_original>
// kernel: bce_dice_loss.1
$region0: #{bce_dice_loss.1}
  #allocation0 [shape = 'u32[]', space=smem, size = 0x4, offset = 0x4, fixed_abs, tag = 'smem constant byte address 0x4 - core index']
  #allocation1 [shape = 'u32[144,128]{1,0:T(1,128)}', space=vmem, size = 0x12000, scoped, tag = 'internal scratch']
  %s0 = inlined_call_operand.vmem [shape: f32[16,128], index: 0, kind: input, shape index: {}]
  %s1 = inlined_call_operand.vmem [shape: f32[16,128], index: 1, kind: input, shape index: {}]
  %s2 = inlined_call_operand.vmem [shape: f32[1,4,8,128], index: 2, kind: output, shape index: {}]
  %s3 = sld [smem:[#allocation0]]
  $region22: #{bce_dice_loss.1} parent=0
    _
  %s5 = ssub.s32 1, %s3
  %s6 = scalar_select 0, %s5, %s3
  // Predicated region
  $region2: #{bce_dice_loss.1} parent=0 // pred_check
    _
  $region3: #{bce_dice_loss.1} parent=0 // pred_check_branch
    %8 = sbr.rel (0) target = $region5
  $region4: #{bce_dice_loss.1} parent=0 // pred_region
    %s9 = sadd.s32 0, 0
    %s10 = smul.u32 2, %s9
    %p11 = scmp.lt.s32.totalorder %s10, 1
    %s12 = scalar_select %p11, %s10, 1
    %s13 = smul.addr %s12, 8
    %s14 = scalar_lea.vmem %s0, %s13
    %s15 = sadd.s32 0, 0
    %s16 = smul.u32 2, %s15
  $region5: #{bce_dice_loss.1} parent=0 // pred_fallthru
    _
  // Predicated region
  $region6: #{bce_dice_loss.1} parent=0 // pred_check
    _
  $region7: #{bce_dice_loss.1} parent=0 // pred_check_branch
    %18 = sbr.rel (0) target = $region9
  $region8: #{bce_dice_loss.1} parent=0 // pred_region
    %s19 = sadd.s32 0, 0
    %s20 = smul.u32 2, %s19
    %p21 = scmp.lt.s32.totalorder %s20, 1
    %s22 = scalar_select %p21, %s20, 1
    %s23 = smul.addr %s22, 8
    %s24 = scalar_lea.vmem %s1, %s23
    %s25 = sadd.s32 0, 0
    %s26 = smul.u32 2, %s25
  $region9: #{bce_dice_loss.1} parent=0 // pred_fallthru
    _
  %s27 = sadd.s32 0, 0
  %s28 = smul.u32 2, %s27
  %p29 = scmp.lt.s32.totalorder %s28, 1
  %s30 = scalar_select %p29, %s28, 1
  %s31 = smul.addr %s30, 8
  %s32 = scalar_lea.vmem %s0, %s31
  %s33 = sadd.s32 0, 0
  %s34 = smul.u32 2, %s33
  %p35 = scmp.lt.s32.totalorder %s34, 1
  %s36 = scalar_select %p35, %s34, 1
  %s37 = smul.addr %s36, 8
  %s38 = scalar_lea.vmem %s1, %s37
  %s39 = sadd.s32 0, 0
  %s40 = smul.u32 2, %s39
  %p41 = scmp.lt.s32.totalorder %s40, 1
  %s42 = scalar_select %p41, %s40, 1
  %s43 = smul.addr %s42, 8
  %s44 = scalar_lea.vmem %s0, %s43
  %s45 = sadd.s32 0, 0
  %s46 = smul.u32 2, %s45
  %s47 = sadd.s32 0, 0
  %s48 = smul.u32 2, %s47
  %p49 = scmp.lt.s32.totalorder %s48, 1
  %s50 = scalar_select %p49, %s48, 1
  %s51 = smul.addr %s50, 8
  %s52 = scalar_lea.vmem %s1, %s51
  %s53 = sadd.s32 0, 0
  %s54 = smul.u32 2, %s53
  %p55 = scmp.eq.s32.totalorder 0, 0
  // Predicated region
  $region10: #{bce_dice_loss.1} parent=0 // pred_check
    %p56 = pneg %p55
  $region11: #{bce_dice_loss.1} parent=0 // pred_check_branch
    %58 = sbr.rel (%p56) target = $region13
  $region12: #{bce_dice_loss.1} parent=0 // pred_region
    %59 = vst [vmem:[%s2] sm:$0xff] 0.0
    %60 = vst [vmem:[%s2 + $0x8] sm:$0xff] 0.0
    %61 = vst [vmem:[%s2 + $0x10] sm:$0xff] 0.0
    %62 = vst [vmem:[%s2 + $0x18] sm:$0xff] 0.0
  $region13: #{bce_dice_loss.1} parent=0 // pred_fallthru
    _
  %v63 = vld [vmem:[%s44] sm:$0xff]
  %v64 = vld [vmem:[%s44 + $0x8] sm:$0xff]
  %v65 = vld [vmem:[%s52] sm:$0xff]
  %v66 = vld [vmem:[%s52 + $0x8] sm:$0xff]
  %v67 = vand.u32 2147483647, %v63
  %v68 = vand.u32 2147483647, %v64
  %v69 = vsub.f32 0.0, %v67
  %v70 = vsub.f32 0.0, %v68
  %v71 = vmul.f32 %v69, 1.442695
  %v72 = vpow.pop %v71
  %v73 = vmul.f32 %v70, 1.442695
  %v74 = vpow.pop %v73
  %vm75 = vcmp.ge.f32.partialorder %v63, 0.0
  %vm76 = vcmp.ge.f32.partialorder %v64, 0.0
  %v77 = vsel %vm75, 1.0, %v72
  %v78 = vsel %vm76, 1.0, %v74
  %v79 = vadd.f32 %v72, 1.0
  %v80 = vadd.f32 %v74, 1.0
  %v81 = vrcp.pop %v79
  %v82 = vmul.f32 %v77, %v81
  %v83 = vrcp.pop %v80
  %v84 = vmul.f32 %v78, %v83
  %v85 = vmax.f32 %v63, 0.0
  %v86 = vmax.f32 %v64, 0.0
  %v87 = vadd.f32 %v72, 1.0
  %v88 = vlog2.pop %v87
  %v89 = vmul.f32 %v88, 0.6931472
  %v90 = vmul.f32 -0.5, %v72
  %v91 = vadd.f32 %v90, 1.0
  %v92 = vmul.f32 %v91, %v72
  %v93 = vand.u32 2147483647, %v72
  %vm94 = vcmp.lt.f32.partialorder %v93, 0.0004427343
  %v95 = vsel %vm94, %v92, %v89
  %v96 = vadd.f32 %v74, 1.0
  %v97 = vlog2.pop %v96
  %v98 = vmul.f32 %v97, 0.6931472
  %v99 = vmul.f32 -0.5, %v74
  %v100 = vadd.f32 %v99, 1.0
  %v101 = vmul.f32 %v100, %v74
  %v102 = vand.u32 2147483647, %v74
  %vm103 = vcmp.lt.f32.partialorder %v102, 0.0004427343
  %v104 = vsel %vm103, %v101, %v98
  %v105 = vadd.f32 %v85, %v95
  %v106 = vadd.f32 %v86, %v104
  %v107 = vmul.f32 %v65, %v63
  %v108 = vmul.f32 %v66, %v64
  %v109 = vsub.f32 %v105, %v107
  %v110 = vsub.f32 %v106, %v108
  %v111 = vld [vmem:[%s2] sm:$0xff]
  %v112 = vmul.f32 %v82, %v65
  %v113 = vmul.f32 %v84, %v66
  %v114 = vadd.f32 %v112, %v113
  %v115 = vadd.f32 %v111, %v114
  %116 = vst [vmem:[%s2] sm:$0xff] %v115
  %s117 = scalar_lea.vmem %s2, 8
  %v118 = vld [vmem:[%s117] sm:$0xff]
  %v119 = vadd.f32 %v82, %v84
  %v120 = vadd.f32 %v118, %v119
  %121 = vst [vmem:[%s117] sm:$0xff] %v120
  %s122 = scalar_lea.vmem %s2, 16
  %v123 = vld [vmem:[%s122] sm:$0xff]
  %v124 = vadd.f32 %v65, %v66
  %v125 = vadd.f32 %v123, %v124
  %126 = vst [vmem:[%s122] sm:$0xff] %v125
  %s127 = scalar_lea.vmem %s2, 24
  %v128 = vld [vmem:[%s127] sm:$0xff]
  %v129 = vadd.f32 %v109, %v110
  %v130 = vadd.f32 %v128, %v129
  %131 = vst [vmem:[%s127] sm:$0xff] %v130
  // Predicated region
  $region14: #{bce_dice_loss.1} parent=0 // pred_check
    _
  $region15: #{bce_dice_loss.1} parent=0 // pred_check_branch
    %133 = sbr.rel (0) target = $region17
  $region16: #{bce_dice_loss.1} parent=0 // pred_region
    _
  $region17: #{bce_dice_loss.1} parent=0 // pred_fallthru
    _
  // Predicated region
  $region18: #{bce_dice_loss.1} parent=0 // pred_check
    _
  $region19: #{bce_dice_loss.1} parent=0 // pred_check_branch
    %135 = sbr.rel (0) target = $region21
  $region20: #{bce_dice_loss.1} parent=0 // pred_region
    _
  $region21: #{bce_dice_loss.1} parent=0 // pred_fallthru
    _

</llo_original>
